<compile_context>
chip_gen: v7x
topology: tpu7x:2x2x1
jax: 0.10.0
libtpu: 0.0.40
codegen_flags: <defaults>
</compile_context>

<pallas_src>
import math

import jax
import jax.numpy as jnp
from jax.experimental import pallas as pl
from jax.experimental.pallas import tpu as pltpu


def _round_up(x, m):
    return ((x + m - 1) // m) * m


# ----------------------------------------------------------------------------
# Kernel factory (static flags baked in; pos_emb ref only present when needed)
# ----------------------------------------------------------------------------
def _make_kernel(*, has_pos, clip_emb, scale, meta_v_emb_dim, hyper_hidden_dim):
    emb_scale = float(meta_v_emb_dim ** 0.5) if scale else 1.0
    H = hyper_hidden_dim

    def kernel(*refs):
        if has_pos:
            (meta_ref, pos_ref,
             w_emb_ref, b_emb_ref, w1_ref, b1_ref,
             w2w_ref, b2w_ref, w2b_ref, b2b_ref,
             emb_out_ref, w_out_ref, b_out_ref) = refs
        else:
            (meta_ref,
             w_emb_ref, b_emb_ref, w1_ref, b1_ref,
             w2w_ref, b2w_ref, w2b_ref, b2b_ref,
             emb_out_ref, w_out_ref, b_out_ref) = refs
            pos_ref = None

        x = meta_ref[...]

        # emb = Linear(meta_v_dim -> meta_v_emb_dim)
        emb = jnp.dot(x, w_emb_ref[...], preferred_element_type=jnp.float32)
        emb = emb + b_emb_ref[...]
        if clip_emb:
            emb = jnp.tanh(emb)
        if has_pos:
            emb = pos_ref[...] + emb * emb_scale
        emb_out_ref[...] = emb.astype(emb_out_ref.dtype)

        # Fused first layers of both heads: one (TB, emb) @ (emb, 2H) matmul.
        h = jnp.dot(emb, w1_ref[...], preferred_element_type=jnp.float32)
        h = jnp.maximum(h + b1_ref[...], 0.0)
        hw = h[:, :H]
        hb = h[:, H:]

        # Second layer of the weight head: (TB, H) @ (H, dyn*out)
        w_flat = jnp.dot(hw, w2w_ref[...], preferred_element_type=jnp.float32)
        w_out_ref[...] = (w_flat + b2w_ref[...]).astype(w_out_ref.dtype)

        # Second layer of the bias head, padded to a lane-dense width.
        b_flat = jnp.dot(hb, w2b_ref[...], preferred_element_type=jnp.float32)
        b_out_ref[...] = (b_flat + b2b_ref[...]).astype(b_out_ref.dtype)

    return kernel


# ----------------------------------------------------------------------------
# Parameter init (mirrors the PyTorch module's shapes) + kernel-layout prep
# ----------------------------------------------------------------------------
def init_params(key, meta_v_dim, meta_v_emb_dim, output_dim,
                hyper_hidden_dim=128, dynamic_hidden_dim=128):
    """Weights stored as (in, out); biases as (1, out)."""
    def linear(k, fan_in, fan_out, w_bound=None):
        kw, kb = jax.random.split(k)
        wb = (1.0 / math.sqrt(2 * fan_in)) if w_bound is None else w_bound
        bb = 1.0 / math.sqrt(fan_in)
        w = jax.random.uniform(kw, (fan_in, fan_out), jnp.float32, -wb, wb)
        b = jax.random.uniform(kb, (1, fan_out), jnp.float32, -bb, bb)
        return w, b

    keys = jax.random.split(key, 5)
    # meta_v_emb_layer: torch kaiming_uniform_(a=sqrt(5)) bound == 1/sqrt(fan_in)
    w_emb, b_emb = linear(keys[0], meta_v_dim, meta_v_emb_dim,
                          w_bound=1.0 / math.sqrt(meta_v_dim))
    w1w, b1w = linear(keys[1], meta_v_emb_dim, hyper_hidden_dim)
    w2w, b2w = linear(keys[2], hyper_hidden_dim, dynamic_hidden_dim * output_dim)
    w1b, b1b = linear(keys[3], meta_v_emb_dim, hyper_hidden_dim)
    w2b, b2b = linear(keys[4], hyper_hidden_dim, output_dim)
    return dict(w_emb=w_emb, b_emb=b_emb,
                w1w=w1w, b1w=b1w, w2w=w2w, b2w=b2w,
                w1b=w1b, b1b=b1b, w2b=w2b, b2b=b2b)


def prepare_params(params, output_dim):
    """Fuse the two heads' first layers and pad the bias head's output columns
    to a multiple of 128 (lane-dense stores). Done once, outside the kernel."""
    H = params["w1w"].shape[1]
    out_pad = _round_up(max(output_dim, 1), 128)
    pad = out_pad - output_dim
    return dict(
        w_emb=params["w_emb"], b_emb=params["b_emb"],
        w1=jnp.concatenate([params["w1w"], params["w1b"]], axis=1),
        b1=jnp.concatenate([params["b1w"], params["b1b"]], axis=1),
        w2w=params["w2w"], b2w=params["b2w"],
        w2b=jnp.pad(params["w2b"], ((0, 0), (0, pad))),
        b2b=jnp.pad(params["b2b"], ((0, 0), (0, pad))),
        hyper_hidden_dim=H, out_pad=out_pad)


# ----------------------------------------------------------------------------
# Tile sizing (conservative for v7x's 64 MiB VMEM / 32 MiB scoped default)
# ----------------------------------------------------------------------------
def _choose_batch_tile(B, row_bytes, weight_bytes, budget_bytes=48 << 20):
    avail = max(budget_bytes - weight_bytes, 2 * 8 * row_bytes)
    tb = avail // (2 * row_bytes)          # double-buffered activation tiles
    tb = max(8, min(int(tb), 512))
    tb = (tb // 8) * 8
    tb = min(tb, _round_up(B, 8))
    return max(tb, 8)


# ----------------------------------------------------------------------------
# Wrapper calling pallas_call
# ----------------------------------------------------------------------------
def hyper_network_forward(prepared, meta_v, pos_emb=None, scale=True, *,
                          meta_v_emb_dim, output_dim, dynamic_hidden_dim,
                          clip_emb=False):
    has_pos = pos_emb is not None
    H = prepared["hyper_hidden_dim"]
    out_pad = prepared["out_pad"]
    dynout = dynamic_hidden_dim * output_dim
    meta_v_dim = meta_v.shape[1]
    B = meta_v.shape[0]

    weight_keys = ("w_emb", "b_emb", "w1", "b1", "w2w", "b2w", "w2b", "b2b")
    weight_bytes = 4 * sum(int(prepared[k].size) for k in weight_keys)
    row_feats = meta_v_dim + meta_v_emb_dim + dynout + out_pad
    if has_pos:
        row_feats += meta_v_emb_dim
    row_bytes = 4 * row_feats

    TB = _choose_batch_tile(B, row_bytes, weight_bytes)
    B_pad = _round_up(B, TB)
    if B_pad != B:
        meta_v = jnp.pad(meta_v, ((0, B_pad - B), (0, 0)))
        if has_pos:
            pos_emb = jnp.pad(pos_emb, ((0, B_pad - B), (0, 0)))
    grid = (B_pad // TB,)

    def act_spec(feat):
        return pl.BlockSpec((TB, feat), lambda i: (i, 0))

    def weight_spec(shape):
        return pl.BlockSpec(shape, lambda i: (0, 0))   # resident across steps

    in_specs = [act_spec(meta_v_dim)]
    inputs = [meta_v]
    if has_pos:
        in_specs.append(act_spec(meta_v_emb_dim))
        inputs.append(pos_emb)
    for k in weight_keys:
        in_specs.append(weight_spec(prepared[k].shape))
        inputs.append(prepared[k])

    out_specs = (act_spec(meta_v_emb_dim), act_spec(dynout), act_spec(out_pad))
    out_shape = (
        jax.ShapeDtypeStruct((B_pad, meta_v_emb_dim), jnp.float32),
        jax.ShapeDtypeStruct((B_pad, dynout), jnp.float32),
        jax.ShapeDtypeStruct((B_pad, out_pad), jnp.float32),
    )

    flops = 2 * B_pad * (meta_v_dim * meta_v_emb_dim
                         + meta_v_emb_dim * 2 * H
                         + H * (dynout + out_pad))
    transcendentals = B_pad * meta_v_emb_dim if clip_emb else 0
    bytes_accessed = weight_bytes + B_pad * row_bytes
    cost = pl.CostEstimate(flops=flops, transcendentals=transcendentals,
                           bytes_accessed=bytes_accessed)

    vmem_need = weight_bytes + 2 * 2 * TB * row_bytes + (4 << 20)
    vmem_limit = int(min(max(vmem_need, 16 << 20), 64 << 20))

    kernel = _make_kernel(has_pos=has_pos, clip_emb=clip_emb, scale=scale,
                          meta_v_emb_dim=meta_v_emb_dim, hyper_hidden_dim=H)

    emb, w_flat, b_padded = pl.pallas_call(
        kernel,
        grid=grid,
        in_specs=in_specs,
        out_specs=out_specs,
        out_shape=out_shape,
        compiler_params=pltpu.CompilerParams(
            dimension_semantics=("parallel",),
            vmem_limit_bytes=vmem_limit),
        cost_estimate=cost,
    )(*inputs)

    # glue: same .view() reshapes as the PyTorch forward (+ drop batch/lane pad)
    emb = emb[:B]
    w = w_flat[:B].reshape(B, output_dim, dynamic_hidden_dim)
    b = b_padded[:B, :output_dim].reshape(B, output_dim, 1)
    return w, b, emb


# ----------------------------------------------------------------------------
# Pure-JAX reference (uses the raw, un-fused params)
# ----------------------------------------------------------------------------
def reference_forward(params, meta_v, pos_emb=None, scale=True, *,
                      meta_v_emb_dim, output_dim, dynamic_hidden_dim,
                      clip_emb=False):
    emb = meta_v @ params["w_emb"] + params["b_emb"]
    if clip_emb:
        emb = jnp.tanh(emb)
    if pos_emb is not None:
        emb = pos_emb + emb * (meta_v_emb_dim ** 0.5 if scale else 1.0)
    hw = jnp.maximum(emb @ params["w1w"] + params["b1w"], 0.0)
    w_flat = hw @ params["w2w"] + params["b2w"]
    hb = jnp.maximum(emb @ params["w1b"] + params["b1b"], 0.0)
    b_flat = hb @ params["w2b"] + params["b2b"]
    return (w_flat.reshape(-1, output_dim, dynamic_hidden_dim),
            b_flat.reshape(-1, output_dim, 1),
            emb)


if __name__ == "__main__":
    # small shapes consistent with the module
    B = 8
    meta_v_dim = 16
    meta_v_emb_dim = 32
    hyper_hidden_dim = 64
    dynamic_hidden_dim = 32
    output_dim = 8

    key = jax.random.PRNGKey(0)
    kp, kx, kpos = jax.random.split(key, 3)

    params = init_params(kp, meta_v_dim, meta_v_emb_dim, output_dim,
                         hyper_hidden_dim, dynamic_hidden_dim)
    prepared = prepare_params(params, output_dim)
    meta_v = jax.random.normal(kx, (B, meta_v_dim), jnp.float32)
    pos_emb = jax.random.normal(kpos, (B, meta_v_emb_dim), jnp.float32)

    kwargs = dict(meta_v_emb_dim=meta_v_emb_dim, output_dim=output_dim,
                  dynamic_hidden_dim=dynamic_hidden_dim)

    # 1) pos_emb + scale path
    w, b, emb = hyper_network_forward(prepared, meta_v, pos_emb=pos_emb,
                                      scale=True, clip_emb=False, **kwargs)
    jax.block_until_ready((w, b, emb))
    w_ref, b_ref, emb_ref = reference_forward(params, meta_v, pos_emb=pos_emb,
                                              scale=True, clip_emb=False, **kwargs)
    assert w.shape == (B, output_dim, dynamic_hidden_dim)
    assert b.shape == (B, output_dim, 1)
    assert emb.shape == (B, meta_v_emb_dim)
    assert jnp.allclose(w, w_ref, atol=1e-5, rtol=1e-5)
    assert jnp.allclose(b, b_ref, atol=1e-5, rtol=1e-5)
    assert jnp.allclose(emb, emb_ref, atol=1e-5, rtol=1e-5)

    # 2) pos_emb=None path (no dummy pos DMA), exercising the tanh branch
    w2, b2, emb2 = hyper_network_forward(prepared, meta_v, pos_emb=None,
                                         clip_emb=True, **kwargs)
    jax.block_until_ready((w2, b2, emb2))
    w2_ref, b2_ref, emb2_ref = reference_forward(params, meta_v, pos_emb=None,
                                                 clip_emb=True, **kwargs)
    assert jnp.allclose(w2, w2_ref, atol=1e-5, rtol=1e-5)
    assert jnp.allclose(b2, b2_ref, atol=1e-5, rtol=1e-5)
    assert jnp.allclose(emb2, emb2_ref, atol=1e-5, rtol=1e-5)

    print("KERNEL_OK")
</pallas_src>

<mosaic_0001>
module attributes {stable_mosaic.version = 11 : i64} {
  func.func @kernel(%arg0: i32, %arg1: memref<8x16xf32, #tpu.memory_space<vmem>>, %arg2: memref<8x32xf32, #tpu.memory_space<vmem>>, %arg3: memref<16x32xf32, #tpu.memory_space<vmem>>, %arg4: memref<1x32xf32, #tpu.memory_space<vmem>>, %arg5: memref<32x128xf32, #tpu.memory_space<vmem>>, %arg6: memref<1x128xf32, #tpu.memory_space<vmem>>, %arg7: memref<64x256xf32, #tpu.memory_space<vmem>>, %arg8: memref<1x256xf32, #tpu.memory_space<vmem>>, %arg9: memref<64x128xf32, #tpu.memory_space<vmem>>, %arg10: memref<1x128xf32, #tpu.memory_space<vmem>>, %arg11: memref<8x32xf32, #tpu.memory_space<vmem>>, %arg12: memref<8x256xf32, #tpu.memory_space<vmem>>, %arg13: memref<8x128xf32, #tpu.memory_space<vmem>>) attributes {dimension_semantics = [#tpu.dimension_semantics<parallel>], iteration_bounds = array<i64: 1>, scalar_prefetch = 0 : i64, scratch_operands = 0 : i64, tpu.core_type = #tpu.core_type<tc>, window_params = [{transform_indices = @transform_0, window_bounds = array<i64: 8, 16>}, {transform_indices = @transform_1, window_bounds = array<i64: 8, 32>}, {pipeline_mode = #tpu.pipeline_mode<synchronous>, transform_indices = @transform_2, window_bounds = array<i64: 16, 32>}, {pipeline_mode = #tpu.pipeline_mode<synchronous>, transform_indices = @transform_3, window_bounds = array<i64: 1, 32>}, {pipeline_mode = #tpu.pipeline_mode<synchronous>, transform_indices = @transform_4, window_bounds = array<i64: 32, 128>}, {pipeline_mode = #tpu.pipeline_mode<synchronous>, transform_indices = @transform_5, window_bounds = array<i64: 1, 128>}, {pipeline_mode = #tpu.pipeline_mode<synchronous>, transform_indices = @transform_6, window_bounds = array<i64: 64, 256>}, {pipeline_mode = #tpu.pipeline_mode<synchronous>, transform_indices = @transform_7, window_bounds = array<i64: 1, 256>}, {pipeline_mode = #tpu.pipeline_mode<synchronous>, transform_indices = @transform_8, window_bounds = array<i64: 64, 128>}, {pipeline_mode = #tpu.pipeline_mode<synchronous>, transform_indices = @transform_9, window_bounds = array<i64: 1, 128>}, {transform_indices = @transform_10, window_bounds = array<i64: 8, 32>}, {transform_indices = @transform_11, window_bounds = array<i64: 8, 256>}, {transform_indices = @transform_12, window_bounds = array<i64: 8, 128>}]} {
    %c0 = arith.constant 0 : index
    %c0_0 = arith.constant 0 : index
    %0 = vector.load %arg1[%c0, %c0_0] : memref<8x16xf32, #tpu.memory_space<vmem>>, vector<8x16xf32>
    %c0_1 = arith.constant 0 : index
    %c0_2 = arith.constant 0 : index
    %1 = vector.load %arg3[%c0_1, %c0_2] : memref<16x32xf32, #tpu.memory_space<vmem>>, vector<16x32xf32>
    %cst = arith.constant dense<0.000000e+00> : vector<8x32xf32>
    %2 = tpu.matmul %0, %1, %cst {dimension_numbers = #tpu.dot_dimension_numbers<[1], [0], [0], [1], [0, 0, 1, 1], [], []>} : vector<8x16xf32>, vector<16x32xf32>, vector<8x32xf32> -> vector<8x32xf32>
    %c0_3 = arith.constant 0 : index
    %c0_4 = arith.constant 0 : index
    %3 = vector.load %arg4[%c0_3, %c0_4] : memref<1x32xf32, #tpu.memory_space<vmem>>, vector<1x32xf32>
    %4 = vector.broadcast %3 : vector<1x32xf32> to vector<8x32xf32>
    %5 = arith.addf %2, %4 : vector<8x32xf32>
    %c0_5 = arith.constant 0 : index
    %c0_6 = arith.constant 0 : index
    %6 = vector.load %arg2[%c0_5, %c0_6] : memref<8x32xf32, #tpu.memory_space<vmem>>, vector<8x32xf32>
    %cst_7 = arith.constant 5.65685415 : f32
    %7 = vector.broadcast %cst_7 : f32 to vector<8x32xf32>
    %8 = arith.mulf %5, %7 : vector<8x32xf32>
    %9 = arith.addf %6, %8 : vector<8x32xf32>
    %c0_8 = arith.constant 0 : index
    %c0_9 = arith.constant 0 : index
    %10 = vector.load %arg11[%c0_8, %c0_9] : memref<8x32xf32, #tpu.memory_space<vmem>>, vector<8x32xf32>
    tpu.vector_store %arg11[%c0_8, %c0_9], %9 {strides = array<i32>} : memref<8x32xf32, #tpu.memory_space<vmem>>, vector<8x32xf32>,
    %c0_10 = arith.constant 0 : index
    %c0_11 = arith.constant 0 : index
    %11 = vector.load %arg5[%c0_10, %c0_11] : memref<32x128xf32, #tpu.memory_space<vmem>>, vector<32x128xf32>
    %cst_12 = arith.constant dense<0.000000e+00> : vector<8x128xf32>
    %12 = tpu.matmul %9, %11, %cst_12 {dimension_numbers = #tpu.dot_dimension_numbers<[1], [0], [0], [1], [0, 0, 1, 1], [], []>} : vector<8x32xf32>, vector<32x128xf32>, vector<8x128xf32> -> vector<8x128xf32>
    %c0_13 = arith.constant 0 : index
    %c0_14 = arith.constant 0 : index
    %13 = vector.load %arg6[%c0_13, %c0_14] : memref<1x128xf32, #tpu.memory_space<vmem>>, vector<1x128xf32>
    %14 = vector.broadcast %13 : vector<1x128xf32> to vector<8x128xf32>
    %15 = arith.addf %12, %14 : vector<8x128xf32>
    %cst_15 = arith.constant 0.000000e+00 : f32
    %16 = vector.broadcast %cst_15 : f32 to vector<8x128xf32>
    %17 = arith.maximumf %15, %16 : vector<8x128xf32>
    %18 = vector.extract_strided_slice %17 {offsets = [0, 0], sizes = [8, 64], strides = [1, 1]} : vector<8x128xf32> to vector<8x64xf32>
    %19 = vector.extract_strided_slice %17 {offsets = [0, 64], sizes = [8, 64], strides = [1, 1]} : vector<8x128xf32> to vector<8x64xf32>
    %c0_16 = arith.constant 0 : index
    %c0_17 = arith.constant 0 : index
    %20 = vector.load %arg7[%c0_16, %c0_17] : memref<64x256xf32, #tpu.memory_space<vmem>>, vector<64x256xf32>
    %cst_18 = arith.constant dense<0.000000e+00> : vector<8x256xf32>
    %21 = tpu.matmul %18, %20, %cst_18 {dimension_numbers = #tpu.dot_dimension_numbers<[1], [0], [0], [1], [0, 0, 1, 1], [], []>} : vector<8x64xf32>, vector<64x256xf32>, vector<8x256xf32> -> vector<8x256xf32>
    %c0_19 = arith.constant 0 : index
    %c0_20 = arith.constant 0 : index
    %22 = vector.load %arg8[%c0_19, %c0_20] : memref<1x256xf32, #tpu.memory_space<vmem>>, vector<1x256xf32>
    %23 = vector.broadcast %22 : vector<1x256xf32> to vector<8x256xf32>
    %24 = arith.addf %21, %23 : vector<8x256xf32>
    %c0_21 = arith.constant 0 : index
    %c0_22 = arith.constant 0 : index
    %25 = vector.load %arg12[%c0_21, %c0_22] : memref<8x256xf32, #tpu.memory_space<vmem>>, vector<8x256xf32>
    tpu.vector_store %arg12[%c0_21, %c0_22], %24 {strides = array<i32>} : memref<8x256xf32, #tpu.memory_space<vmem>>, vector<8x256xf32>,
    %c0_23 = arith.constant 0 : index
    %c0_24 = arith.constant 0 : index
    %26 = vector.load %arg9[%c0_23, %c0_24] : memref<64x128xf32, #tpu.memory_space<vmem>>, vector<64x128xf32>
    %cst_25 = arith.constant dense<0.000000e+00> : vector<8x128xf32>
    %27 = tpu.matmul %19, %26, %cst_25 {dimension_numbers = #tpu.dot_dimension_numbers<[1], [0], [0], [1], [0, 0, 1, 1], [], []>} : vector<8x64xf32>, vector<64x128xf32>, vector<8x128xf32> -> vector<8x128xf32>
    %c0_26 = arith.constant 0 : index
    %c0_27 = arith.constant 0 : index
    %28 = vector.load %arg10[%c0_26, %c0_27] : memref<1x128xf32, #tpu.memory_space<vmem>>, vector<1x128xf32>
    %29 = vector.broadcast %28 : vector<1x128xf32> to vector<8x128xf32>
    %30 = arith.addf %27, %29 : vector<8x128xf32>
    %c0_28 = arith.constant 0 : index
    %c0_29 = arith.constant 0 : index
    %31 = vector.load %arg13[%c0_28, %c0_29] : memref<8x128xf32, #tpu.memory_space<vmem>>, vector<8x128xf32>
    tpu.vector_store %arg13[%c0_28, %c0_29], %30 {strides = array<i32>} : memref<8x128xf32, #tpu.memory_space<vmem>>, vector<8x128xf32>,
    return
  }
  func.func @transform_0(%arg0: i32) -> (i32, i32) {
    %c0_i32 = arith.constant 0 : i32
    %c0_i32_0 = arith.constant 0 : i32
    return %arg0, %c0_i32 : i32, i32
  }
  func.func @transform_1(%arg0: i32) -> (i32, i32) {
    %c0_i32 = arith.constant 0 : i32
    %c0_i32_0 = arith.constant 0 : i32
    return %arg0, %c0_i32 : i32, i32
  }
  func.func @transform_2(%arg0: i32) -> (i32, i32) {
    %c0_i32 = arith.constant 0 : i32
    %c0_i32_0 = arith.constant 0 : i32
    %c0_i32_1 = arith.constant 0 : i32
    return %c0_i32, %c0_i32_0 : i32, i32
  }
  func.func @transform_3(%arg0: i32) -> (i32, i32) {
    %c0_i32 = arith.constant 0 : i32
    %c0_i32_0 = arith.constant 0 : i32
    %c0_i32_1 = arith.constant 0 : i32
    return %c0_i32, %c0_i32_0 : i32, i32
  }
  func.func @transform_4(%arg0: i32) -> (i32, i32) {
    %c0_i32 = arith.constant 0 : i32
    %c0_i32_0 = arith.constant 0 : i32
    %c0_i32_1 = arith.constant 0 : i32
    return %c0_i32, %c0_i32_0 : i32, i32
  }
  func.func @transform_5(%arg0: i32) -> (i32, i32) {
    %c0_i32 = arith.constant 0 : i32
    %c0_i32_0 = arith.constant 0 : i32
    %c0_i32_1 = arith.constant 0 : i32
    return %c0_i32, %c0_i32_0 : i32, i32
  }
  func.func @transform_6(%arg0: i32) -> (i32, i32) {
    %c0_i32 = arith.constant 0 : i32
    %c0_i32_0 = arith.constant 0 : i32
    %c0_i32_1 = arith.constant 0 : i32
    return %c0_i32, %c0_i32_0 : i32, i32
  }
  func.func @transform_7(%arg0: i32) -> (i32, i32) {
    %c0_i32 = arith.constant 0 : i32
    %c0_i32_0 = arith.constant 0 : i32
    %c0_i32_1 = arith.constant 0 : i32
    return %c0_i32, %c0_i32_0 : i32, i32
  }
  func.func @transform_8(%arg0: i32) -> (i32, i32) {
    %c0_i32 = arith.constant 0 : i32
    %c0_i32_0 = arith.constant 0 : i32
    %c0_i32_1 = arith.constant 0 : i32
    return %c0_i32, %c0_i32_0 : i32, i32
  }
  func.func @transform_9(%arg0: i32) -> (i32, i32) {
    %c0_i32 = arith.constant 0 : i32
    %c0_i32_0 = arith.constant 0 : i32
    %c0_i32_1 = arith.constant 0 : i32
    return %c0_i32, %c0_i32_0 : i32, i32
  }
  func.func @transform_10(%arg0: i32) -> (i32, i32) {
    %c0_i32 = arith.constant 0 : i32
    %c0_i32_0 = arith.constant 0 : i32
    return %arg0, %c0_i32 : i32, i32
  }
  func.func @transform_11(%arg0: i32) -> (i32, i32) {
    %c0_i32 = arith.constant 0 : i32
    %c0_i32_0 = arith.constant 0 : i32
    return %arg0, %c0_i32 : i32, i32
  }
  func.func @transform_12(%arg0: i32) -> (i32, i32) {
    %c0_i32 = arith.constant 0 : i32
    %c0_i32_0 = arith.constant 0 : i32
    return %arg0, %c0_i32 : i32, i32
  }
}

</mosaic_0001>

<llo_original>
// kernel: tpu_custom_call.1
$region0: #{tpu_custom_call.1}
  #allocation0 [shape = 'u32[]', space=smem, size = 0x4, offset = 0x4, fixed_abs, tag = 'smem constant byte address 0x4 - core index']
  #allocation1 [shape = 'u32[144,128]{1,0:T(1,128)}', space=vmem, size = 0x12000, scoped, tag = 'internal scratch']
  %s0 = inlined_call_operand.hbm [shape: f32[8,16], index: 0, kind: input, shape index: {}]
  %s1 = inlined_call_operand.hbm [shape: f32[8,32], index: 1, kind: input, shape index: {}]
  %s2 = inlined_call_operand.hbm [shape: f32[16,32], index: 2, kind: input, shape index: {}]
  %s3 = inlined_call_operand.vmem [shape: f32[1,32], index: 3, kind: input, shape index: {}]
  %s4 = inlined_call_operand.hbm [shape: f32[32,128], index: 4, kind: input, shape index: {}]
  %s5 = inlined_call_operand.vmem [shape: f32[1,128], index: 5, kind: input, shape index: {}]
  %s6 = inlined_call_operand.hbm [shape: f32[64,256], index: 6, kind: input, shape index: {}]
  %s7 = inlined_call_operand.vmem [shape: f32[1,256], index: 7, kind: input, shape index: {}]
  %s8 = inlined_call_operand.hbm [shape: f32[64,128], index: 8, kind: input, shape index: {}]
  %s9 = inlined_call_operand.vmem [shape: f32[1,128], index: 9, kind: input, shape index: {}]
  %s10 = inlined_call_operand.hbm [shape: f32[8,32], index: 10, kind: output, shape index: {0}]
  %s11 = inlined_call_operand.hbm [shape: f32[8,256], index: 11, kind: output, shape index: {1}]
  %s12 = inlined_call_operand.hbm [shape: f32[8,128], index: 12, kind: output, shape index: {2}]
  %13 = xla_tuple %s10, %s11, %s12
  %s14 = sld [smem:[#allocation0]]
  $region90: #{tpu_custom_call.1} parent=0
    _
  %s16 = ssub.s32 1, %s14
  %s17 = scalar_select 0, %s16, %s14
  $region1: #{tpu_custom_call.1} parent=0
    #allocation2 [shape = 'u8[4096]{0}', space=vmem, size = 0x1000, scoped, tag = 'input window, operand 0, single buffered']
    #allocation3 [shape = 's32[1]{0}', space=sflag, size = 0x4, scoped, tag = 'scoped memory for tpu_custom_call.1']
    #allocation4 [shape = 's32[1]{0}', space=sflag, size = 0x4, scoped, tag = 'scoped memory for tpu_custom_call.1']
    #allocation5 [shape = 'u8[4096]{0}', space=vmem, size = 0x1000, scoped, tag = 'input window, operand 1, single buffered']
    #allocation6 [shape = 's32[1]{0}', space=sflag, size = 0x4, scoped, tag = 'scoped memory for tpu_custom_call.1']
    #allocation7 [shape = 'u8[8192]{0}', space=vmem, size = 0x2000, scoped, tag = 'input window, operand 2, single buffered']
    #allocation8 [shape = 'u8[16384]{0}', space=vmem, size = 0x4000, scoped, tag = 'input window, operand 4, single buffered']
    #allocation9 [shape = 's32[1]{0}', space=sflag, size = 0x4, scoped, tag = 'scoped memory for tpu_custom_call.1']
    #allocation10 [shape = 'u8[65536]{0}', space=vmem, size = 0x10000, scoped, tag = 'input window, operand 6, single buffered']
    #allocation11 [shape = 'u8[32768]{0}', space=vmem, size = 0x8000, scoped, tag = 'input window, operand 8, single buffered']
    #allocation12 [shape = 's32[1]{0}', space=sflag, size = 0x4, scoped, tag = 'scoped memory for tpu_custom_call.1']
    #allocation13 [shape = 'u8[4096]{0}', space=vmem, size = 0x1000, scoped, tag = 'output window, operand 0, single buffered']
    #allocation14 [shape = 'u8[8192]{0}', space=vmem, size = 0x2000, scoped, tag = 'output window, operand 1, single buffered']
    #allocation15 [shape = 's32[1]{0}', space=sflag, size = 0x4, scoped, tag = 'scoped memory for tpu_custom_call.1']
    #allocation16 [shape = 'u8[4096]{0}', space=vmem, size = 0x1000, scoped, tag = 'output window, operand 2, single buffered']
    %18 = vsyncpa [#allocation3], 0
    %19 = vsyncpa [#allocation6], 0
    %20 = vsyncpa [#allocation9], 0
    %21 = vsyncpa [#allocation12], 0
    %22 = vsyncpa [#allocation4], 0
    %23 = vsyncpa [#allocation15], 0
    // Predicated region
    $region2: #{tpu_custom_call.1} parent=1 // pred_check
      _
    $region3: #{tpu_custom_call.1} parent=1 // pred_check_branch
      %25 = sbr.rel (0) target = $region5
    $region4: #{tpu_custom_call.1} parent=1 // pred_region
      %s27 = ssub.s32 128, 128
      %28 = vsyncadd [#allocation3], %s27
      %s30 = sshll.u32 [#allocation2], 4
      %s31 = int_to_ptr.vmem [resolvable:$true] %s30
      %33 = dma.hbm_to_vmem [thread:$0]  %s0, 128, %s31, [#allocation3]
    $region5: #{tpu_custom_call.1} parent=1 // pred_fallthru
      _
    // Predicated region
    $region6: #{tpu_custom_call.1} parent=1 // pred_check
      _
    $region7: #{tpu_custom_call.1} parent=1 // pred_check_branch
      %35 = sbr.rel (0) target = $region9
    $region8: #{tpu_custom_call.1} parent=1 // pred_region
      %s37 = ssub.s32 128, 128
      %38 = vsyncadd [#allocation6], %s37
      %s40 = sshll.u32 [#allocation5], 4
      %s41 = int_to_ptr.vmem [resolvable:$true] %s40
      %43 = dma.hbm_to_vmem [thread:$0]  %s1, 128, %s41, [#allocation6]
    $region9: #{tpu_custom_call.1} parent=1 // pred_fallthru
      _
    // Predicated region
    $region10: #{tpu_custom_call.1} parent=1 // pred_check
      _
    $region11: #{tpu_custom_call.1} parent=1 // pred_check_branch
      %45 = sbr.rel (0) target = $region13
    $region12: #{tpu_custom_call.1} parent=1 // pred_region
      %s47 = ssub.s32 256, 256
      %48 = vsyncadd [#allocation6], %s47
      %s49 = sshll.u32 [#allocation7], 4
      %s50 = int_to_ptr.vmem [resolvable:$true] %s49
      %55 = dma.hbm_to_vmem [thread:$0]  %s2, 256, %s50, [#allocation6], 128, 128, 8
    $region13: #{tpu_custom_call.1} parent=1 // pred_fallthru
      _
    // Predicated region
    $region14: #{tpu_custom_call.1} parent=1 // pred_check
      _
    $region15: #{tpu_custom_call.1} parent=1 // pred_check_branch
      %57 = sbr.rel (0) target = $region17
    $region16: #{tpu_custom_call.1} parent=1 // pred_region
      _
    $region17: #{tpu_custom_call.1} parent=1 // pred_fallthru
      _
    // Predicated region
    $region18: #{tpu_custom_call.1} parent=1 // pred_check
      _
    $region19: #{tpu_custom_call.1} parent=1 // pred_check_branch
      %59 = sbr.rel (0) target = $region21
    $region20: #{tpu_custom_call.1} parent=1 // pred_region
      %s61 = ssub.s32 512, 512
      %62 = vsyncadd [#allocation9], %s61
      %s63 = sshll.u32 [#allocation8], 4
      %s64 = int_to_ptr.vmem [resolvable:$true] %s63
      %69 = dma.hbm_to_vmem [thread:$0]  %s4, 512, %s64, [#allocation9], 128, 128, 8
    $region21: #{tpu_custom_call.1} parent=1 // pred_fallthru
      _
    // Predicated region
    $region22: #{tpu_custom_call.1} parent=1 // pred_check
      _
    $region23: #{tpu_custom_call.1} parent=1 // pred_check_branch
      %71 = sbr.rel (0) target = $region25
    $region24: #{tpu_custom_call.1} parent=1 // pred_region
      _
    $region25: #{tpu_custom_call.1} parent=1 // pred_fallthru
      _
    // Predicated region
    $region26: #{tpu_custom_call.1} parent=1 // pred_check
      _
    $region27: #{tpu_custom_call.1} parent=1 // pred_check_branch
      %73 = sbr.rel (0) target = $region29
    $region28: #{tpu_custom_call.1} parent=1 // pred_region
      %s75 = ssub.s32 2048, 2048
      %76 = vsyncadd [#allocation9], %s75
      %s77 = sshll.u32 [#allocation10], 4
      %s78 = int_to_ptr.vmem [resolvable:$true] %s77
      %83 = dma.hbm_to_vmem [thread:$0]  %s6, 2048, %s78, [#allocation9], 256, 256, 16
    $region29: #{tpu_custom_call.1} parent=1 // pred_fallthru
      _
    // Predicated region
    $region30: #{tpu_custom_call.1} parent=1 // pred_check
      _
    $region31: #{tpu_custom_call.1} parent=1 // pred_check_branch
      %85 = sbr.rel (0) target = $region33
    $region32: #{tpu_custom_call.1} parent=1 // pred_region
      _
    $region33: #{tpu_custom_call.1} parent=1 // pred_fallthru
      _
    // Predicated region
    $region34: #{tpu_custom_call.1} parent=1 // pred_check
      _
    $region35: #{tpu_custom_call.1} parent=1 // pred_check_branch
      %87 = sbr.rel (0) target = $region37
    $region36: #{tpu_custom_call.1} parent=1 // pred_region
      %s89 = ssub.s32 1024, 1024
      %90 = vsyncadd [#allocation12], %s89
      %s91 = sshll.u32 [#allocation11], 4
      %s92 = int_to_ptr.vmem [resolvable:$true] %s91
      %97 = dma.hbm_to_vmem [thread:$0]  %s8, 1024, %s92, [#allocation12], 128, 128, 8
    $region37: #{tpu_custom_call.1} parent=1 // pred_fallthru
      _
    // Predicated region
    $region38: #{tpu_custom_call.1} parent=1 // pred_check
      _
    $region39: #{tpu_custom_call.1} parent=1 // pred_check_branch
      %99 = sbr.rel (0) target = $region41
    $region40: #{tpu_custom_call.1} parent=1 // pred_region
      _
    $region41: #{tpu_custom_call.1} parent=1 // pred_fallthru
      _
    // Predicated region
    $region42: #{tpu_custom_call.1} parent=1 // pred_check
      _
    $region43: #{tpu_custom_call.1} parent=1 // pred_check_branch
      %101 = sbr.rel (0) target = $region45
    $region44: #{tpu_custom_call.1} parent=1 // pred_region
      %102 = dma.done [#allocation3], 128
    $region45: #{tpu_custom_call.1} parent=1 // pred_fallthru
      _
    // Predicated region
    $region46: #{tpu_custom_call.1} parent=1 // pred_check
      _
    $region47: #{tpu_custom_call.1} parent=1 // pred_check_branch
      %104 = sbr.rel (0) target = $region49
    $region48: #{tpu_custom_call.1} parent=1 // pred_region
      %105 = dma.done [#allocation6], 128
    $region49: #{tpu_custom_call.1} parent=1 // pred_fallthru
      _
    // Predicated region
    $region50: #{tpu_custom_call.1} parent=1 // pred_check
      _
    $region51: #{tpu_custom_call.1} parent=1 // pred_check_branch
      %107 = sbr.rel (0) target = $region53
    $region52: #{tpu_custom_call.1} parent=1 // pred_region
      %108 = dma.done [#allocation6], 256
    $region53: #{tpu_custom_call.1} parent=1 // pred_fallthru
      _
    // Predicated region
    $region54: #{tpu_custom_call.1} parent=1 // pred_check
      _
    $region55: #{tpu_custom_call.1} parent=1 // pred_check_branch
      %110 = sbr.rel (0) target = $region57
    $region56: #{tpu_custom_call.1} parent=1 // pred_region
      %111 = dma.done [#allocation9], 512
    $region57: #{tpu_custom_call.1} parent=1 // pred_fallthru
      _
    // Predicated region
    $region58: #{tpu_custom_call.1} parent=1 // pred_check
      _
    $region59: #{tpu_custom_call.1} parent=1 // pred_check_branch
      %113 = sbr.rel (0) target = $region61
    $region60: #{tpu_custom_call.1} parent=1 // pred_region
      %114 = dma.done [#allocation9], 2048
    $region61: #{tpu_custom_call.1} parent=1 // pred_fallthru
      _
    // Predicated region
    $region62: #{tpu_custom_call.1} parent=1 // pred_check
      _
    $region63: #{tpu_custom_call.1} parent=1 // pred_check_branch
      %116 = sbr.rel (0) target = $region65
    $region64: #{tpu_custom_call.1} parent=1 // pred_region
      %117 = dma.done [#allocation12], 1024
    $region65: #{tpu_custom_call.1} parent=1 // pred_fallthru
      _
    %v118 = vld [vmem:[#allocation2] sm:$0xff]
    %v119 = vld [vmem:[#allocation7] sm:$0xff]
    %v120 = vld [vmem:[#allocation7 + $0x8] sm:$0xff]
    %v121 = vld [vmem:[%s3] sm:$0x1]
    %v123 = vlaneseq
    %v124 = vshrl.u32 %v123, 7
    %v125 = vsub.s32 0, %v124
    %v126 = vrot.slane %v121, %v125
    %vm128 = vcmask 130048
    %v130 = vsel %vm128, %v118, 0
    %132 = vmatprep.subr.mxu0 0.0
    %133 = vmatpush1.msra.mxu0 %v119
    %134 = vmatprep.subr.mxu0 0.0
    %135 = vmatpush1.msra.mxu0 %v120
    %136 = vmatprep.subr.mxu0 0.0
    %137 = vmatpush1.msra.mxu0 0.0
    %138 = vmatprep.subr.mxu0 0.0
    %139 = vmatpush1.msra.mxu0 0.0
    %140 = vmatprep.subr.mxu0 0.0
    %141 = vmatpush1.msra.mxu0 0.0
    %142 = vmatprep.subr.mxu0 0.0
    %143 = vmatpush1.msra.mxu0 0.0
    %144 = vmatprep.subr.mxu0 0.0
    %145 = vmatpush1.msra.mxu0 0.0
    %146 = vmatprep.subr.mxu0 0.0
    %147 = vmatpush1.msra.mxu0 0.0
    %148 = vmatprep.subr.mxu0 0.0
    %149 = vmatpush1.msra.mxu0 0.0
    %150 = vmatprep.subr.mxu0 0.0
    %151 = vmatpush1.msra.mxu0 0.0
    %152 = vmatprep.subr.mxu0 0.0
    %153 = vmatpush1.msra.mxu0 0.0
    %154 = vmatprep.subr.mxu0 0.0
    %155 = vmatpush1.msra.mxu0 0.0
    %156 = vmatprep.subr.mxu0 0.0
    %157 = vmatpush1.msra.mxu0 0.0
    %158 = vmatprep.subr.mxu0 0.0
    %159 = vmatpush1.msra.mxu0 0.0
    %160 = vmatprep.subr.mxu0 0.0
    %161 = vmatpush1.msra.mxu0 0.0
    %162 = vmatprep.subr.mxu0 0.0
    %163 = vmatpush1.msra.mxu0 0.0
    %164 = vmatprep.subr.mxu0 0.0
    %165 = vmatpush1.msra.mxu0 0.0
    %166 = vmatprep.subr.mxu0 0.0
    %167 = vmatpush1.msra.mxu0 0.0
    %168 = vmatprep.subr.mxu0 0.0
    %169 = vmatpush1.msra.mxu0 0.0
    %170 = vmatprep.subr.mxu0 0.0
    %171 = vmatpush1.msra.mxu0 0.0
    %172 = vmatprep.subr.mxu0 0.0
    %173 = vmatpush1.msra.mxu0 0.0
    %174 = vmatprep.subr.mxu0 0.0
    %175 = vmatpush1.msra.mxu0 0.0
    %176 = vmatprep.subr.mxu0 0.0
    %177 = vmatpush1.msra.mxu0 0.0
    %178 = vmatprep.subr.mxu0 0.0
    %179 = vmatpush1.msra.mxu0 0.0
    %180 = vmatprep.subr.mxu0 0.0
    %181 = vmatpush1.msra.mxu0 0.0
    %182 = vmatprep.subr.mxu0 0.0
    %183 = vmatpush1.msra.mxu0 0.0
    %184 = vmatprep.subr.mxu0 0.0
    %185 = vmatpush1.msra.mxu0 0.0
    %186 = vmatprep.subr.mxu0 0.0
    %187 = vmatpush1.msra.mxu0 0.0
    %188 = vmatprep.subr.mxu0 0.0
    %189 = vmatpush1.msra.mxu0 0.0
    %190 = vmatprep.subr.mxu0 0.0
    %191 = vmatpush1.msra.mxu0 0.0
    %192 = vmatprep.subr.mxu0 0.0
    %193 = vmatpush1.msra.mxu0 0.0
    %194 = vmatprep.subr.mxu0 0.0
    %195 = vmatpush1.msra.mxu0 0.0
    %196 = vmatprep.mubr.f32.mxu0 0.0
    %197 = vmatmul.mubr.f32.gmra.mrb[0].mxu0 %v130
    %v198 = vpop.f32.mrb[0].mxu0
    %v199 = vadd.f32 %v126, %v198
    %v200 = vpop.f32.mrb[0].mxu0
    %201 = vdwg.mxu0
    %v202 = vld [vmem:[#allocation5] sm:$0xff]
    %v203 = vmul.f32 %v199, 5.656854
    %v204 = vadd.f32 %v202, %v203
    %vm205 = vcmask 261120
    %206 = vst.msk [vmem:[#allocation13] sm:$0xff] %vm205, %v204
    %v207 = vld [vmem:[#allocation8] sm:$0xff]
    %v208 = vld [vmem:[#allocation8 + $0x8] sm:$0xff]
    %v209 = vld [vmem:[#allocation8 + $0x10] sm:$0xff]
    %v210 = vld [vmem:[#allocation8 + $0x18] sm:$0xff]
    %v211 = vld [vmem:[%s5] sm:$0x1]
    %v213 = vlaneseq
    %v214 = vshrl.u32 %v213, 7
    %v215 = vsub.s32 0, %v214
    %v216 = vrot.slane %v211, %v215
    %v219 = vsel %vm205, %v204, 0
    %221 = vmatprep.subr.mxu0 0.0
    %222 = vmatpush1.msra.mxu0 %v207
    %223 = vmatprep.subr.mxu0 0.0
    %224 = vmatpush1.msra.mxu0 %v208
    %225 = vmatprep.subr.mxu0 0.0
    %226 = vmatpush1.msra.mxu0 %v209
    %227 = vmatprep.subr.mxu0 0.0
    %228 = vmatpush1.msra.mxu0 %v210
    %229 = vmatprep.subr.mxu0 0.0
    %230 = vmatpush1.msra.mxu0 0.0
    %231 = vmatprep.subr.mxu0 0.0
    %232 = vmatpush1.msra.mxu0 0.0
    %233 = vmatprep.subr.mxu0 0.0
    %234 = vmatpush1.msra.mxu0 0.0
    %235 = vmatprep.subr.mxu0 0.0
    %236 = vmatpush1.msra.mxu0 0.0
    %237 = vmatprep.subr.mxu0 0.0
    %238 = vmatpush1.msra.mxu0 0.0
    %239 = vmatprep.subr.mxu0 0.0
    %240 = vmatpush1.msra.mxu0 0.0
    %241 = vmatprep.subr.mxu0 0.0
    %242 = vmatpush1.msra.mxu0 0.0
    %243 = vmatprep.subr.mxu0 0.0
    %244 = vmatpush1.msra.mxu0 0.0
    %245 = vmatprep.subr.mxu0 0.0
    %246 = vmatpush1.msra.mxu0 0.0
    %247 = vmatprep.subr.mxu0 0.0
    %248 = vmatpush1.msra.mxu0 0.0
    %249 = vmatprep.subr.mxu0 0.0
    %250 = vmatpush1.msra.mxu0 0.0
    %251 = vmatprep.subr.mxu0 0.0
    %252 = vmatpush1.msra.mxu0 0.0
    %253 = vmatprep.subr.mxu0 0.0
    %254 = vmatpush1.msra.mxu0 0.0
    %255 = vmatprep.subr.mxu0 0.0
    %256 = vmatpush1.msra.mxu0 0.0
    %257 = vmatprep.subr.mxu0 0.0
    %258 = vmatpush1.msra.mxu0 0.0
    %259 = vmatprep.subr.mxu0 0.0
    %260 = vmatpush1.msra.mxu0 0.0
    %261 = vmatprep.subr.mxu0 0.0
    %262 = vmatpush1.msra.mxu0 0.0
    %263 = vmatprep.subr.mxu0 0.0
    %264 = vmatpush1.msra.mxu0 0.0
    %265 = vmatprep.subr.mxu0 0.0
    %266 = vmatpush1.msra.mxu0 0.0
    %267 = vmatprep.subr.mxu0 0.0
    %268 = vmatpush1.msra.mxu0 0.0
    %269 = vmatprep.subr.mxu0 0.0
    %270 = vmatpush1.msra.mxu0 0.0
    %271 = vmatprep.subr.mxu0 0.0
    %272 = vmatpush1.msra.mxu0 0.0
    %273 = vmatprep.subr.mxu0 0.0
    %274 = vmatpush1.msra.mxu0 0.0
    %275 = vmatprep.subr.mxu0 0.0
    %276 = vmatpush1.msra.mxu0 0.0
    %277 = vmatprep.subr.mxu0 0.0
    %278 = vmatpush1.msra.mxu0 0.0
    %279 = vmatprep.subr.mxu0 0.0
    %280 = vmatpush1.msra.mxu0 0.0
    %281 = vmatprep.subr.mxu0 0.0
    %282 = vmatpush1.msra.mxu0 0.0
    %283 = vmatprep.subr.mxu0 0.0
    %284 = vmatpush1.msra.mxu0 0.0
    %285 = vmatprep.mubr.f32.mxu0 0.0
    %286 = vmatmul.mubr.f32.gmra.mrb[0].mxu0 %v219
    %v287 = vpop.f32.mrb[0].mxu0
    %v288 = vadd.f32 %v216, %v287
    %v289 = vpop.f32.mrb[0].mxu0
    %290 = vdwg.mxu0
    %v291 = vmax.f32 %v288, 0.0
    %v292 = vld [vmem:[#allocation10] sm:$0xff]
    %v293 = vld [vmem:[#allocation10 + $0x8] sm:$0xff]
    %v294 = vld [vmem:[#allocation10 + $0x10] sm:$0xff]
    %v295 = vld [vmem:[#allocation10 + $0x18] sm:$0xff]
    %v296 = vld [vmem:[#allocation10 + $0x20] sm:$0xff]
    %v297 = vld [vmem:[#allocation10 + $0x28] sm:$0xff]
    %v298 = vld [vmem:[#allocation10 + $0x30] sm:$0xff]
    %v299 = vld [vmem:[#allocation10 + $0x38] sm:$0xff]
    %v300 = vld [vmem:[#allocation10 + $0x40] sm:$0xff]
    %v301 = vld [vmem:[#allocation10 + $0x48] sm:$0xff]
    %v302 = vld [vmem:[#allocation10 + $0x50] sm:$0xff]
    %v303 = vld [vmem:[#allocation10 + $0x58] sm:$0xff]
    %v304 = vld [vmem:[#allocation10 + $0x60] sm:$0xff]
    %v305 = vld [vmem:[#allocation10 + $0x68] sm:$0xff]
    %v306 = vld [vmem:[#allocation10 + $0x70] sm:$0xff]
    %v307 = vld [vmem:[#allocation10 + $0x78] sm:$0xff]
    %v308 = vld [vmem:[%s7] sm:$0x3]
    %v310 = vlaneseq
    %v311 = vshrl.u32 %v310, 7
    %v312 = vsub.s32 0, %v311
    %v313 = vrot.slane %v308, %v312
    %v314 = vlaneseq
    %v315 = vshrl.u32 %v314, 7
    %v316 = vsub.s32 1, %v315
    %v317 = vrot.slane %v308, %v316
    %vm320 = vcmask 523264
    %v322 = vsel %vm320, %v291, 0
    %324 = vmatprep.subr.mxu0 %v293
    %325 = vmatpush1.msra.mxu0 %v292
    %326 = vmatprep.subr.mxu0 %v295
    %327 = vmatpush1.msra.mxu0 %v294
    %328 = vmatprep.subr.mxu0 %v297
    %329 = vmatpush1.msra.mxu0 %v296
    %330 = vmatprep.subr.mxu0 %v299
    %331 = vmatpush1.msra.mxu0 %v298
    %332 = vmatprep.subr.mxu0 %v301
    %333 = vmatpush1.msra.mxu0 %v300
    %334 = vmatprep.subr.mxu0 %v303
    %335 = vmatpush1.msra.mxu0 %v302
    %336 = vmatprep.subr.mxu0 %v305
    %337 = vmatpush1.msra.mxu0 %v304
    %338 = vmatprep.subr.mxu0 %v307
    %339 = vmatpush1.msra.mxu0 %v306
    %340 = vmatprep.subr.mxu0 0.0
    %341 = vmatpush1.msra.mxu0 0.0
    %342 = vmatprep.subr.mxu0 0.0
    %343 = vmatpush1.msra.mxu0 0.0
    %344 = vmatprep.subr.mxu0 0.0
    %345 = vmatpush1.msra.mxu0 0.0
    %346 = vmatprep.subr.mxu0 0.0
    %347 = vmatpush1.msra.mxu0 0.0
    %348 = vmatprep.subr.mxu0 0.0
    %349 = vmatpush1.msra.mxu0 0.0
    %350 = vmatprep.subr.mxu0 0.0
    %351 = vmatpush1.msra.mxu0 0.0
    %352 = vmatprep.subr.mxu0 0.0
    %353 = vmatpush1.msra.mxu0 0.0
    %354 = vmatprep.subr.mxu0 0.0
    %355 = vmatpush1.msra.mxu0 0.0
    %356 = vmatprep.subr.mxu0 0.0
    %357 = vmatpush1.msra.mxu0 0.0
    %358 = vmatprep.subr.mxu0 0.0
    %359 = vmatpush1.msra.mxu0 0.0
    %360 = vmatprep.subr.mxu0 0.0
    %361 = vmatpush1.msra.mxu0 0.0
    %362 = vmatprep.subr.mxu0 0.0
    %363 = vmatpush1.msra.mxu0 0.0
    %364 = vmatprep.subr.mxu0 0.0
    %365 = vmatpush1.msra.mxu0 0.0
    %366 = vmatprep.subr.mxu0 0.0
    %367 = vmatpush1.msra.mxu0 0.0
    %368 = vmatprep.subr.mxu0 0.0
    %369 = vmatpush1.msra.mxu0 0.0
    %370 = vmatprep.subr.mxu0 0.0
    %371 = vmatpush1.msra.mxu0 0.0
    %372 = vmatprep.subr.mxu0 0.0
    %373 = vmatpush1.msra.mxu0 0.0
    %374 = vmatprep.subr.mxu0 0.0
    %375 = vmatpush1.msra.mxu0 0.0
    %376 = vmatprep.subr.mxu0 0.0
    %377 = vmatpush1.msra.mxu0 0.0
    %378 = vmatprep.subr.mxu0 0.0
    %379 = vmatpush1.msra.mxu0 0.0
    %380 = vmatprep.subr.mxu0 0.0
    %381 = vmatpush1.msra.mxu0 0.0
    %382 = vmatprep.subr.mxu0 0.0
    %383 = vmatpush1.msra.mxu0 0.0
    %384 = vmatprep.subr.mxu0 0.0
    %385 = vmatpush1.msra.mxu0 0.0
    %386 = vmatprep.subr.mxu0 0.0
    %387 = vmatpush1.msra.mxu0 0.0
    %388 = vmatprep.mubr.f32.mxu0 0.0
    %389 = vmatmul.mubr.f32.gmra.mrb[0].mxu0 %v322
    %v390 = vpop.f32.mrb[0].mxu0
    %v391 = vadd.f32 %v313, %v390
    %v392 = vpop.f32.mrb[0].mxu0
    %v393 = vadd.f32 %v317, %v392
    %394 = vdwg.mxu0
    %395 = vst [vmem:[#allocation14] sm:$0xff] %v391
    %396 = vst [vmem:[#allocation14 + $0x8] sm:$0xff] %v393
    %v397 = vld [vmem:[#allocation11] sm:$0xff]
    %v398 = vld [vmem:[#allocation11 + $0x8] sm:$0xff]
    %v399 = vld [vmem:[#allocation11 + $0x10] sm:$0xff]
    %v400 = vld [vmem:[#allocation11 + $0x18] sm:$0xff]
    %v401 = vld [vmem:[#allocation11 + $0x20] sm:$0xff]
    %v402 = vld [vmem:[#allocation11 + $0x28] sm:$0xff]
    %v403 = vld [vmem:[#allocation11 + $0x30] sm:$0xff]
    %v404 = vld [vmem:[#allocation11 + $0x38] sm:$0xff]
    %v405 = vld [vmem:[%s9] sm:$0x1]
    %v407 = vlaneseq
    %v408 = vshrl.u32 %v407, 7
    %v409 = vsub.s32 0, %v408
    %v410 = vrot.slane %v405, %v409
    %412 = vrot.lane.b32.xlu0 %v291, 64
    %v413 = vpop.permute.xlu0 %412
    %v414 = vsel %vm320, %v413, 0
    %416 = vmatprep.subr.mxu0 0.0
    %417 = vmatpush1.msra.mxu0 %v397
    %418 = vmatprep.subr.mxu0 0.0
    %419 = vmatpush1.msra.mxu0 %v398
    %420 = vmatprep.subr.mxu0 0.0
    %421 = vmatpush1.msra.mxu0 %v399
    %422 = vmatprep.subr.mxu0 0.0
    %423 = vmatpush1.msra.mxu0 %v400
    %424 = vmatprep.subr.mxu0 0.0
    %425 = vmatpush1.msra.mxu0 %v401
    %426 = vmatprep.subr.mxu0 0.0
    %427 = vmatpush1.msra.mxu0 %v402
    %428 = vmatprep.subr.mxu0 0.0
    %429 = vmatpush1.msra.mxu0 %v403
    %430 = vmatprep.subr.mxu0 0.0
    %431 = vmatpush1.msra.mxu0 %v404
    %432 = vmatprep.subr.mxu0 0.0
    %433 = vmatpush1.msra.mxu0 0.0
    %434 = vmatprep.subr.mxu0 0.0
    %435 = vmatpush1.msra.mxu0 0.0
    %436 = vmatprep.subr.mxu0 0.0
    %437 = vmatpush1.msra.mxu0 0.0
    %438 = vmatprep.subr.mxu0 0.0
    %439 = vmatpush1.msra.mxu0 0.0
    %440 = vmatprep.subr.mxu0 0.0
    %441 = vmatpush1.msra.mxu0 0.0
    %442 = vmatprep.subr.mxu0 0.0
    %443 = vmatpush1.msra.mxu0 0.0
    %444 = vmatprep.subr.mxu0 0.0
    %445 = vmatpush1.msra.mxu0 0.0
    %446 = vmatprep.subr.mxu0 0.0
    %447 = vmatpush1.msra.mxu0 0.0
    %448 = vmatprep.subr.mxu0 0.0
    %449 = vmatpush1.msra.mxu0 0.0
    %450 = vmatprep.subr.mxu0 0.0
    %451 = vmatpush1.msra.mxu0 0.0
    %452 = vmatprep.subr.mxu0 0.0
    %453 = vmatpush1.msra.mxu0 0.0
    %454 = vmatprep.subr.mxu0 0.0
    %455 = vmatpush1.msra.mxu0 0.0
    %456 = vmatprep.subr.mxu0 0.0
    %457 = vmatpush1.msra.mxu0 0.0
    %458 = vmatprep.subr.mxu0 0.0
    %459 = vmatpush1.msra.mxu0 0.0
    %460 = vmatprep.subr.mxu0 0.0
    %461 = vmatpush1.msra.mxu0 0.0
    %462 = vmatprep.subr.mxu0 0.0
    %463 = vmatpush1.msra.mxu0 0.0
    %464 = vmatprep.subr.mxu0 0.0
    %465 = vmatpush1.msra.mxu0 0.0
    %466 = vmatprep.subr.mxu0 0.0
    %467 = vmatpush1.msra.mxu0 0.0
    %468 = vmatprep.subr.mxu0 0.0
    %469 = vmatpush1.msra.mxu0 0.0
    %470 = vmatprep.subr.mxu0 0.0
    %471 = vmatpush1.msra.mxu0 0.0
    %472 = vmatprep.subr.mxu0 0.0
    %473 = vmatpush1.msra.mxu0 0.0
    %474 = vmatprep.subr.mxu0 0.0
    %475 = vmatpush1.msra.mxu0 0.0
    %476 = vmatprep.subr.mxu0 0.0
    %477 = vmatpush1.msra.mxu0 0.0
    %478 = vmatprep.subr.mxu0 0.0
    %479 = vmatpush1.msra.mxu0 0.0
    %480 = vmatprep.mubr.f32.mxu0 0.0
    %481 = vmatmul.mubr.f32.gmra.mrb[0].mxu0 %v414
    %v482 = vpop.f32.mrb[0].mxu0
    %v483 = vadd.f32 %v410, %v482
    %v484 = vpop.f32.mrb[0].mxu0
    %485 = vdwg.mxu0
    %486 = vst [vmem:[#allocation16] sm:$0xff] %v483
    // Predicated region
    $region66: #{tpu_custom_call.1} parent=1 // pred_check
      _
    $region67: #{tpu_custom_call.1} parent=1 // pred_check_branch
      %488 = sbr.rel (0) target = $region69
    $region68: #{tpu_custom_call.1} parent=1 // pred_region
      %s490 = ssub.s32 128, 128
      %491 = vsyncadd [#allocation4], %s490
      %s493 = sshll.u32 [#allocation13], 4
      %s494 = int_to_ptr.vmem [resolvable:$true] %s493
      %496 = dma.vmem_to_hbm [thread:$0]  %s494, 128, %s10, [#allocation4]
    $region69: #{tpu_custom_call.1} parent=1 // pred_fallthru
      _
    // Predicated region
    $region70: #{tpu_custom_call.1} parent=1 // pred_check
      _
    $region71: #{tpu_custom_call.1} parent=1 // pred_check_branch
      %498 = sbr.rel (0) target = $region73
    $region72: #{tpu_custom_call.1} parent=1 // pred_region
      %s500 = ssub.s32 256, 256
      %501 = vsyncadd [#allocation15], %s500
      %s503 = sshll.u32 [#allocation14], 4
      %s504 = int_to_ptr.vmem [resolvable:$true] %s503
      %506 = dma.vmem_to_hbm [thread:$0]  %s504, 256, %s11, [#allocation15]
    $region73: #{tpu_custom_call.1} parent=1 // pred_fallthru
      _
    // Predicated region
    $region74: #{tpu_custom_call.1} parent=1 // pred_check
      _
    $region75: #{tpu_custom_call.1} parent=1 // pred_check_branch
      %508 = sbr.rel (0) target = $region77
    $region76: #{tpu_custom_call.1} parent=1 // pred_region
      %s510 = ssub.s32 128, 128
      %511 = vsyncadd [#allocation15], %s510
      %s513 = sshll.u32 [#allocation16], 4
      %s514 = int_to_ptr.vmem [resolvable:$true] %s513
      %516 = dma.vmem_to_hbm [thread:$0]  %s514, 128, %s12, [#allocation15]
    $region77: #{tpu_custom_call.1} parent=1 // pred_fallthru
      _
    // Predicated region
    $region78: #{tpu_custom_call.1} parent=1 // pred_check
      _
    $region79: #{tpu_custom_call.1} parent=1 // pred_check_branch
      %518 = sbr.rel (0) target = $region81
    $region80: #{tpu_custom_call.1} parent=1 // pred_region
      %519 = dma.done [#allocation4], 128
    $region81: #{tpu_custom_call.1} parent=1 // pred_fallthru
      _
    // Predicated region
    $region82: #{tpu_custom_call.1} parent=1 // pred_check
      _
    $region83: #{tpu_custom_call.1} parent=1 // pred_check_branch
      %521 = sbr.rel (0) target = $region85
    $region84: #{tpu_custom_call.1} parent=1 // pred_region
      %522 = dma.done [#allocation15], 256
    $region85: #{tpu_custom_call.1} parent=1 // pred_fallthru
      _
    // Predicated region
    $region86: #{tpu_custom_call.1} parent=1 // pred_check
      _
    $region87: #{tpu_custom_call.1} parent=1 // pred_check_branch
      %524 = sbr.rel (0) target = $region89
    $region88: #{tpu_custom_call.1} parent=1 // pred_region
      %525 = dma.done [#allocation15], 128
    $region89: #{tpu_custom_call.1} parent=1 // pred_fallthru
      _
    %526 = vsyncpa [#allocation3], 1
    %527 = vsyncpa [#allocation6], 1
    %528 = vsyncpa [#allocation9], 1
    %529 = vsyncpa [#allocation12], 1
    %530 = vsyncpa [#allocation4], 1
    %531 = vsyncpa [#allocation15], 1

</llo_original>
